<compile_context>
chip_gen: v5e
topology: v5e:2x2
jax: 0.10.0
libtpu: 0.0.40
codegen_flags: <defaults>
</compile_context>

<pallas_src>
import jax
import jax.numpy as jnp
from jax.experimental import pallas as pl
from jax.experimental.pallas import tpu as pltpu


def _affine2d_kernel(x_ref, w_ref, b_ref, o_ref):
    # x_ref/o_ref: (Rb, Hb).  w_ref/b_ref: (Rb, 1) or (1, Hb) f32 (broadcast).
    x = x_ref[...].astype(jnp.float32)
    o_ref[...] = (x * w_ref[...] + b_ref[...]).astype(o_ref.dtype)


def _sublane_base(itemsize):
    # Native packed-sublane granule per dtype width: f32 -> 8, bf16/f16 -> 16,
    # int8/fp8 -> 32.  Keeps loads/stores unmasked and layout-free.
    if itemsize >= 4:
        return 8
    if itemsize == 2:
        return 16
    return 32


def _choose_blocks(rows, lanes, itemsize, base, target_bytes):
    """Jointly size (Rb, Hb): Rb a multiple of `base`, Hb a multiple of 128,
    targeting ~target_bytes per x/out block.  cdiv partial tiling handles the
    ragged last block, so blocks never blow up on non-aligned shapes."""
    lane_q = 128
    lanes_padded = pl.cdiv(lanes, lane_q) * lane_q
    rows_padded = pl.cdiv(rows, base) * base

    # Grow the lane block first (lane-dense DMAs / unmasked stores), capped by
    # the byte budget for a minimal-height block.
    max_hb = max(lane_q, (target_bytes // (base * itemsize)) // lane_q * lane_q)
    hb = min(lanes_padded, max_hb)

    # Fill the remaining byte budget with rows (no artificial 64-row cap).
    max_rb = max(base, (target_bytes // (hb * itemsize)) // base * base)
    rb = min(rows_padded, max_rb)
    return rb, hb


def affine2d(x, weight, bias):
    """x: (N, C, H, W); weight, bias: (1, C, 1, 1). Returns (N, C, H, W)."""
    N, C, H, W = x.shape
    hw = H * W
    itemsize = x.dtype.itemsize
    base = _sublane_base(itemsize)
    target_bytes = 2 << 20  # ~2 MiB per x/out block: roofline on all gens,
    #                         fits v5e/v7x scoped-VMEM with double-buffering.

    w_c = weight.reshape(C).astype(jnp.float32)
    b_c = bias.reshape(C).astype(jnp.float32)

    if hw >= 128:
        # Layout A: sublanes = N*C rows, lanes = H*W (already lane-dense).
        rows, lanes = N * C, hw
        x2 = x.reshape(rows, lanes)
        w2 = jnp.broadcast_to(w_c[None, :], (N, C)).reshape(rows, 1)
        b2 = jnp.broadcast_to(b_c[None, :], (N, C)).reshape(rows, 1)
        param_block = ("rows", 1)
    else:
        # Layout B: tiny spatial maps -> fuse channels into the lane axis so
        # the output lane width is >= 128 (no masked partial stores).
        rows, lanes = N, C * hw
        x2 = x.reshape(rows, lanes)
        w2 = jnp.repeat(w_c, hw).reshape(1, lanes)
        b2 = jnp.repeat(b_c, hw).reshape(1, lanes)
        param_block = (1, "lanes")

    rb, hb = _choose_blocks(rows, lanes, itemsize, base, target_bytes)
    grid = (pl.cdiv(rows, rb), pl.cdiv(lanes, hb))

    if param_block == ("rows", 1):
        p_shape = (rb, 1)
        p_map = lambda r, h: (r, 0)
    else:
        p_shape = (1, hb)
        p_map = lambda r, h: (0, h)

    out = pl.pallas_call(
        _affine2d_kernel,
        out_shape=jax.ShapeDtypeStruct((rows, lanes), x.dtype),
        grid=grid,
        in_specs=[
            pl.BlockSpec((rb, hb), lambda r, h: (r, h)),  # x slab
            pl.BlockSpec(p_shape, p_map),                 # weight
            pl.BlockSpec(p_shape, p_map),                 # bias
        ],
        out_specs=pl.BlockSpec((rb, hb), lambda r, h: (r, h)),
        compiler_params=pltpu.CompilerParams(
            dimension_semantics=("parallel", "parallel")
        ),
    )(x2, w2, b2)

    return out.reshape(N, C, H, W)


if __name__ == "__main__":
    # Deterministic parameter init matching Affine2d.__init__(planes, init_w=0.1)
    key = jax.random.PRNGKey(0)
    init_w = 0.1

    # Main shape (layout A: H*W >= 128).
    N, C, H, W = 2, 4, 16, 16
    weight = jnp.full((1, C, 1, 1), init_w, dtype=jnp.float32)
    bias = jnp.zeros((1, C, 1, 1), dtype=jnp.float32)
    k0, k1 = jax.random.split(key)
    x = jax.random.normal(k0, (N, C, H, W), dtype=jnp.float32)

    y = affine2d(x, weight, bias)
    y = jax.block_until_ready(y)
    y_ref = x * weight + bias
    assert y.shape == (N, C, H, W)
    assert jnp.allclose(y, y_ref, atol=1e-6, rtol=1e-6)

    # Secondary shape exercising the lane-dense small-H*W path (layout B).
    N2, C2, H2, W2 = 2, 8, 7, 7
    weight2 = jnp.full((1, C2, 1, 1), init_w, dtype=jnp.float32)
    bias2 = jnp.zeros((1, C2, 1, 1), dtype=jnp.float32)
    x2 = jax.random.normal(k1, (N2, C2, H2, W2), dtype=jnp.float32)

    y2 = affine2d(x2, weight2, bias2)
    y2 = jax.block_until_ready(y2)
    y2_ref = x2 * weight2 + bias2
    assert y2.shape == (N2, C2, H2, W2)
    assert jnp.allclose(y2, y2_ref, atol=1e-6, rtol=1e-6)

    print("KERNEL_OK")
</pallas_src>

<mosaic_0001>
module attributes {stable_mosaic.version = 11 : i64} {
  func.func @_affine2d_kernel(%arg0: i32, %arg1: i32, %arg2: memref<8x256xf32, #tpu.memory_space<vmem>>, %arg3: memref<8x1xf32, #tpu.memory_space<vmem>>, %arg4: memref<8x1xf32, #tpu.memory_space<vmem>>, %arg5: memref<8x256xf32, #tpu.memory_space<vmem>>) attributes {dimension_semantics = [#tpu.dimension_semantics<parallel>, #tpu.dimension_semantics<parallel>], iteration_bounds = array<i64: 1, 1>, scalar_prefetch = 0 : i64, scratch_operands = 0 : i64, tpu.core_type = #tpu.core_type<tc>, window_params = [{transform_indices = @transform_0, window_bounds = array<i64: 8, 256>}, {transform_indices = @transform_1, window_bounds = array<i64: 8, 1>}, {transform_indices = @transform_2, window_bounds = array<i64: 8, 1>}, {transform_indices = @transform_3, window_bounds = array<i64: 8, 256>}]} {
    %c0 = arith.constant 0 : index
    %c0_0 = arith.constant 0 : index
    %0 = vector.load %arg2[%c0, %c0_0] : memref<8x256xf32, #tpu.memory_space<vmem>>, vector<8x256xf32>
    %c0_1 = arith.constant 0 : index
    %c0_2 = arith.constant 0 : index
    %1 = vector.load %arg3[%c0_1, %c0_2] : memref<8x1xf32, #tpu.memory_space<vmem>>, vector<8x1xf32>
    %2 = vector.broadcast %1 : vector<8x1xf32> to vector<8x256xf32>
    %3 = arith.mulf %0, %2 : vector<8x256xf32>
    %c0_3 = arith.constant 0 : index
    %c0_4 = arith.constant 0 : index
    %4 = vector.load %arg4[%c0_3, %c0_4] : memref<8x1xf32, #tpu.memory_space<vmem>>, vector<8x1xf32>
    %5 = vector.broadcast %4 : vector<8x1xf32> to vector<8x256xf32>
    %6 = arith.addf %3, %5 : vector<8x256xf32>
    %c0_5 = arith.constant 0 : index
    %c0_6 = arith.constant 0 : index
    %7 = vector.load %arg5[%c0_5, %c0_6] : memref<8x256xf32, #tpu.memory_space<vmem>>, vector<8x256xf32>
    tpu.vector_store %arg5[%c0_5, %c0_6], %6 {strides = array<i32>} : memref<8x256xf32, #tpu.memory_space<vmem>>, vector<8x256xf32>,
    return
  }
  func.func @transform_0(%arg0: i32, %arg1: i32) -> (i32, i32) {
    %c0_i32 = arith.constant 0 : i32
    return %arg0, %arg1 : i32, i32
  }
  func.func @transform_1(%arg0: i32, %arg1: i32) -> (i32, i32) {
    %c0_i32 = arith.constant 0 : i32
    %c0_i32_0 = arith.constant 0 : i32
    return %arg0, %c0_i32 : i32, i32
  }
  func.func @transform_2(%arg0: i32, %arg1: i32) -> (i32, i32) {
    %c0_i32 = arith.constant 0 : i32
    %c0_i32_0 = arith.constant 0 : i32
    return %arg0, %c0_i32 : i32, i32
  }
  func.func @transform_3(%arg0: i32, %arg1: i32) -> (i32, i32) {
    %c0_i32 = arith.constant 0 : i32
    return %arg0, %arg1 : i32, i32
  }
}

</mosaic_0001>

<llo_original>
// kernel: tpu_custom_call.1
$region0: #{tpu_custom_call.1}
  #allocation0 [shape = 'u32[]', space=smem, size = 0x4, offset = 0x4, fixed_abs, tag = 'smem constant byte address 0x4 - core index']
  #allocation1 [shape = 'u32[72,128]{1,0:T(1,128)}', space=vmem, size = 0x9000, scoped, tag = 'internal scratch']
  %s0 = inlined_call_operand.vmem [shape: f32[8,256], index: 0, kind: input, shape index: {}]
  %s1 = inlined_call_operand.vmem [shape: f32[8,1], index: 1, kind: input, shape index: {}]
  %s2 = inlined_call_operand.vmem [shape: f32[8,1], index: 2, kind: input, shape index: {}]
  %s3 = inlined_call_operand.hbm [shape: f32[8,256], index: 3, kind: output, shape index: {}]
  %s4 = sld [smem:[#allocation0]]
  $region22: #{tpu_custom_call.1} parent=0
    _
  %s6 = ssub.s32 1, %s4
  %s7 = scalar_select 0, %s6, %s4
  $region1: #{tpu_custom_call.1} parent=0
    #allocation2 [shape = 'u8[8192]{0}', space=vmem, size = 0x2000, scoped, tag = 'output window, operand 0, single buffered']
    #allocation3 [shape = 's32[1]{0}', space=sflag, size = 0x4, scoped, tag = 'scoped memory for tpu_custom_call.1']
    %8 = vsyncpa [#allocation3], 0
    // Predicated region
    $region2: #{tpu_custom_call.1} parent=1 // pred_check
      _
    $region3: #{tpu_custom_call.1} parent=1 // pred_check_branch
      %10 = sbr.rel (0) target = $region5
    $region4: #{tpu_custom_call.1} parent=1 // pred_region
      _
    $region5: #{tpu_custom_call.1} parent=1 // pred_fallthru
      _
    // Predicated region
    $region6: #{tpu_custom_call.1} parent=1 // pred_check
      _
    $region7: #{tpu_custom_call.1} parent=1 // pred_check_branch
      %12 = sbr.rel (0) target = $region9
    $region8: #{tpu_custom_call.1} parent=1 // pred_region
      _
    $region9: #{tpu_custom_call.1} parent=1 // pred_fallthru
      _
    // Predicated region
    $region10: #{tpu_custom_call.1} parent=1 // pred_check
      _
    $region11: #{tpu_custom_call.1} parent=1 // pred_check_branch
      %14 = sbr.rel (0) target = $region13
    $region12: #{tpu_custom_call.1} parent=1 // pred_region
      _
    $region13: #{tpu_custom_call.1} parent=1 // pred_fallthru
      _
    %v15 = vld [vmem:[%s0] sm:$0xff]
    %v16 = vld [vmem:[%s0 + $0x8] sm:$0xff]
    %v17 = vld [vmem:[%s1] sm:$0xff]
    %19 = vset.pattern.permute.xlu0 0
    %20 = vperm.xlu0 %19, %v17
    %v21 = vpop.permute.xlu0 %20
    %v23 = vmul.f32 %v15, %v21
    %v24 = vmul.f32 %v16, %v21
    %v25 = vld [vmem:[%s2] sm:$0xff]
    %27 = vset.pattern.permute.xlu0 0
    %28 = vperm.xlu0 %27, %v25
    %v29 = vpop.permute.xlu0 %28
    %v31 = vadd.f32 %v23, %v29
    %v32 = vadd.f32 %v24, %v29
    %33 = vst [vmem:[#allocation2] sm:$0xff] %v31
    %34 = vst [vmem:[#allocation2 + $0x8] sm:$0xff] %v32
    // Predicated region
    $region14: #{tpu_custom_call.1} parent=1 // pred_check
      _
    $region15: #{tpu_custom_call.1} parent=1 // pred_check_branch
      %36 = sbr.rel (0) target = $region17
    $region16: #{tpu_custom_call.1} parent=1 // pred_region
      %38 = vsyncadd [#allocation3], 0
      %s40 = sshll.u32 [#allocation2], 4
      %s41 = int_to_ptr.vmem [resolvable:$true] %s40
      %s42 = sshll.u32 %s3, 4
      %s43 = int_to_ptr.hbm [resolvable:$true] %s42
      %45 = dma.vmem_to_hbm [thread:$0]  %s41, 256, %s43, [#allocation3]
    $region17: #{tpu_custom_call.1} parent=1 // pred_fallthru
      _
    // Predicated region
    $region18: #{tpu_custom_call.1} parent=1 // pred_check
      _
    $region19: #{tpu_custom_call.1} parent=1 // pred_check_branch
      %47 = sbr.rel (0) target = $region21
    $region20: #{tpu_custom_call.1} parent=1 // pred_region
      %49 = dma.done [#allocation3], 256
    $region21: #{tpu_custom_call.1} parent=1 // pred_fallthru
      _
    %50 = vsyncpa [#allocation3], 1

</llo_original>
